<compile_context>
chip_gen: v7x
topology: tpu7x:2x2x1
jax: 0.10.0
libtpu: 0.0.40
codegen_flags: <defaults>
</compile_context>

<pallas_src>
import jax
import jax.numpy as jnp
from jax.experimental import pallas as pl
from jax.experimental.pallas import tpu as pltpu

# ---- small synthetic shapes consistent with the module's forward ----
B = 2              # batch
C_IN = 3           # RGB input channels
H = W = 14         # input spatial
KH = KW = 3        # backbone conv kernel
STRIDE = 2
PAD = 1
H_OUT = W_OUT = 7  # (14 + 2*1 - 3)//2 + 1 = 7 -> matches resnet's 7x7 feature map
HW = H_OUT * W_OUT # 49 patch positions
K = C_IN * KH * KW # 27 im2col depth
C_FEAT = 32        # backbone feature channels (2048 in real resnet101)

# ---- padded, MXU/vreg-friendly shapes ----
ROWS = B * HW                        # 98   (batch folded into one kernel call)
ROWS_PAD = ((ROWS + 7) // 8) * 8     # 104  (sublane-aligned)
K_PAD = 32                           # sublane-packed contraction depth (27 -> 32)
C_PAD = 128                          # lane-dense output width (unmasked vst)
B_PAD = 8                            # sublane-aligned rows for the avg_feats output


def visual_extractor_kernel(x_ref, w_ref, b_ref, pf_ref, af_ref):
    # x_ref: (ROWS_PAD, K_PAD) bf16 zero-padded im2col patches for the whole batch
    # w_ref: (K_PAD, C_PAD)    bf16 zero-padded conv weight
    # b_ref: (1, C_PAD)        f32  zero-padded bias
    # pf_ref: (ROWS_PAD, C_PAD) f32 features (conv + bias + ReLU), lane-dense
    # af_ref: (B_PAD, C_PAD)    f32 per-batch average over the 49 spatial positions
    f = jnp.dot(x_ref[...], w_ref[...], preferred_element_type=jnp.float32)  # MXU, f32 acc
    f = jnp.maximum(f + b_ref[...], 0.0)                                     # f32 bias + ReLU
    pf_ref[...] = f

    # Fused AvgPool2d(kernel_size=7, stride=1, padding=0) on the 7x7 map == per-batch mean
    # over the 49 spatial rows.  Implemented as a tiny pooling matmul whose matrix is zero
    # on pad rows 98..103 (those hold ReLU(bias), not zeros) and zero for pad batches 2..7.
    r = jax.lax.broadcasted_iota(jnp.int32, (B_PAD, ROWS_PAD), 1)            # row index
    bidx = jax.lax.broadcasted_iota(jnp.int32, (B_PAD, ROWS_PAD), 0)         # batch index
    lower = bidx * HW
    sel = (r >= lower) & (r < lower + HW) & (r < ROWS)
    pool = jnp.where(sel, jnp.float32(1.0 / HW), jnp.float32(0.0))           # (B_PAD, ROWS_PAD)
    af_ref[...] = jnp.dot(pool, f, preferred_element_type=jnp.float32)


def _im2col(images):
    # images: NCHW (B, C_IN, H, W) -> patches (B, HW, K); pure glue (reshapes/slices),
    # fused by XLA inside the jitted wrapper.
    xp = jnp.pad(images, ((0, 0), (0, 0), (PAD, PAD), (PAD, PAD)))
    cols = []
    for dy in range(KH):
        for dx in range(KW):
            cols.append(xp[:, :,
                           dy:dy + STRIDE * H_OUT:STRIDE,
                           dx:dx + STRIDE * W_OUT:STRIDE])          # (B, C_IN, 7, 7)
    p = jnp.stack(cols, axis=2)                                     # (B, C_IN, KH*KW, 7, 7)
    p = p.reshape(B, K, HW)                                         # (B, K, HW)
    return jnp.transpose(p, (0, 2, 1))                              # (B, HW, K)


def prepare_params(w, b):
    # One-time (hoisted) weight/bias padding + bf16 cast — NOT on the per-call jit path.
    w_bf_pad = jnp.pad(w, ((0, K_PAD - K), (0, C_PAD - C_FEAT))).astype(jnp.bfloat16)
    b_pad = jnp.pad(b, ((0, 0), (0, C_PAD - C_FEAT)))               # stays f32
    return w_bf_pad, b_pad


@jax.jit
def visual_extractor(images, w_bf_pad, b_pad):
    # Only the image-dependent im2col glue is built per call.
    patches = _im2col(images).reshape(ROWS, K)                                  # (98, 27)
    patches = jnp.pad(patches, ((0, ROWS_PAD - ROWS), (0, K_PAD - K)))          # (104, 32)
    patches_bf = patches.astype(jnp.bfloat16)

    flops = 2 * ROWS_PAD * K_PAD * C_PAD + 2 * B_PAD * ROWS_PAD * C_PAD
    bytes_accessed = (patches_bf.size * 2 + w_bf_pad.size * 2 + b_pad.size * 4
                      + ROWS_PAD * C_PAD * 4 + B_PAD * C_PAD * 4)

    pf_pad, avg_pad = pl.pallas_call(
        visual_extractor_kernel,
        out_shape=(jax.ShapeDtypeStruct((ROWS_PAD, C_PAD), jnp.float32),
                   jax.ShapeDtypeStruct((B_PAD, C_PAD), jnp.float32)),
        in_specs=[
            pl.BlockSpec(memory_space=pltpu.MemorySpace.VMEM),
            pl.BlockSpec(memory_space=pltpu.MemorySpace.VMEM),
            pl.BlockSpec(memory_space=pltpu.MemorySpace.VMEM),
        ],
        out_specs=(pl.BlockSpec(memory_space=pltpu.MemorySpace.VMEM),
                   pl.BlockSpec(memory_space=pltpu.MemorySpace.VMEM)),
        cost_estimate=pl.CostEstimate(flops=flops, transcendentals=0,
                                      bytes_accessed=bytes_accessed),
    )(patches_bf, w_bf_pad, b_pad)

    # Slice off padding; (B, HW, C) is already torch's reshape(B, C, -1).permute(0, 2, 1).
    pf = pf_pad[:ROWS, :C_FEAT].reshape(B, HW, C_FEAT)
    avg = avg_pad[:B, :C_FEAT]                                                   # (B, C_FEAT)
    return pf, avg


if __name__ == "__main__":
    key = jax.random.PRNGKey(0)
    k_img, k_w, k_b = jax.random.split(key, 3)

    images = jax.random.normal(k_img, (B, C_IN, H, W), dtype=jnp.float32)
    # deterministic synthetic "backbone" params: conv weight flattened to (K, C_FEAT)
    w = jax.random.normal(k_w, (K, C_FEAT), dtype=jnp.float32) * 0.1
    b = jax.random.normal(k_b, (1, C_FEAT), dtype=jnp.float32) * 0.1

    w_bf_pad, b_pad = prepare_params(w, b)
    patch_feats, avg_feats = visual_extractor(images, w_bf_pad, b_pad)
    jax.block_until_ready((patch_feats, avg_feats))

    # pure-JAX reference of the same forward semantics (matching bf16 MXU input rounding)
    patches_ref = _im2col(images).astype(jnp.bfloat16).astype(jnp.float32)
    w_ref = w.astype(jnp.bfloat16).astype(jnp.float32)
    f_ref = jnp.maximum(
        jnp.einsum("bpk,kc->bpc", patches_ref, w_ref,
                   precision=jax.lax.Precision.HIGHEST) + b[None], 0.0)
    pf_ref = f_ref                                   # (B, HW, C) == permute(0,2,1) layout
    avg_ref = jnp.mean(f_ref, axis=1)                # (B, C)

    assert patch_feats.shape == (B, HW, C_FEAT)
    assert avg_feats.shape == (B, C_FEAT)
    assert jnp.allclose(patch_feats, pf_ref, atol=1e-3, rtol=1e-3)
    assert jnp.allclose(avg_feats, avg_ref, atol=1e-3, rtol=1e-3)

    print("KERNEL_OK")
</pallas_src>

<mosaic_0001>
module attributes {stable_mosaic.version = 11 : i64} {
  func.func @visual_extractor_kernel(%arg0: memref<104x32xbf16, #tpu.memory_space<vmem>>, %arg1: memref<32x128xbf16, #tpu.memory_space<vmem>>, %arg2: memref<1x128xf32, #tpu.memory_space<vmem>>, %arg3: memref<104x128xf32, #tpu.memory_space<vmem>>, %arg4: memref<8x128xf32, #tpu.memory_space<vmem>>) attributes {dimension_semantics = [], scalar_prefetch = 0 : i64, scratch_operands = 0 : i64, tpu.core_type = #tpu.core_type<tc>} {
    %c0 = arith.constant 0 : index
    %c0_0 = arith.constant 0 : index
    %0 = vector.load %arg0[%c0, %c0_0] : memref<104x32xbf16, #tpu.memory_space<vmem>>, vector<104x32xbf16>
    %c0_1 = arith.constant 0 : index
    %c0_2 = arith.constant 0 : index
    %1 = vector.load %arg1[%c0_1, %c0_2] : memref<32x128xbf16, #tpu.memory_space<vmem>>, vector<32x128xbf16>
    %cst = arith.constant dense<0.000000e+00> : vector<104x128xf32>
    %2 = tpu.matmul %0, %1, %cst {dimension_numbers = #tpu.dot_dimension_numbers<[1], [0], [0], [1], [0, 0, 1, 1], [], []>} : vector<104x32xbf16>, vector<32x128xbf16>, vector<104x128xf32> -> vector<104x128xf32>
    %c0_3 = arith.constant 0 : index
    %c0_4 = arith.constant 0 : index
    %3 = vector.load %arg2[%c0_3, %c0_4] : memref<1x128xf32, #tpu.memory_space<vmem>>, vector<1x128xf32>
    %4 = vector.broadcast %3 : vector<1x128xf32> to vector<104x128xf32>
    %5 = arith.addf %2, %4 : vector<104x128xf32>
    %cst_5 = arith.constant 0.000000e+00 : f32
    %6 = vector.broadcast %cst_5 : f32 to vector<104x128xf32>
    %7 = arith.maximumf %5, %6 : vector<104x128xf32>
    %c0_6 = arith.constant 0 : index
    %c0_7 = arith.constant 0 : index
    %8 = vector.load %arg3[%c0_6, %c0_7] : memref<104x128xf32, #tpu.memory_space<vmem>>, vector<104x128xf32>
    tpu.vector_store %arg3[%c0_6, %c0_7], %7 {strides = array<i32>} : memref<104x128xf32, #tpu.memory_space<vmem>>, vector<104x128xf32>,
    %9 = tpu.iota {dimensions = array<i32: 1>} : vector<8x104xi32>
    %10 = tpu.iota {dimensions = array<i32: 0>} : vector<8x104xi32>
    %c49_i32 = arith.constant 49 : i32
    %11 = vector.broadcast %c49_i32 : i32 to vector<8x104xi32>
    %12 = arith.muli %10, %11 : vector<8x104xi32>
    %13 = arith.cmpi sge, %9, %12 : vector<8x104xi32>
    %c49_i32_8 = arith.constant 49 : i32
    %14 = vector.broadcast %c49_i32_8 : i32 to vector<8x104xi32>
    %15 = arith.addi %12, %14 : vector<8x104xi32>
    %16 = arith.cmpi slt, %9, %15 : vector<8x104xi32>
    %17 = arith.andi %13, %16 : vector<8x104xi1>
    %c98_i32 = arith.constant 98 : i32
    %18 = vector.broadcast %c98_i32 : i32 to vector<8x104xi32>
    %19 = arith.cmpi slt, %9, %18 : vector<8x104xi32>
    %20 = arith.andi %17, %19 : vector<8x104xi1>
    %cst_9 = arith.constant 0.0204081628 : f32
    %cst_10 = arith.constant 0.000000e+00 : f32
    %21 = vector.broadcast %cst_9 : f32 to vector<8x104xf32>
    %22 = vector.broadcast %cst_10 : f32 to vector<8x104xf32>
    %23 = arith.select %20, %21, %22 : vector<8x104xi1>, vector<8x104xf32>
    %cst_11 = arith.constant dense<0.000000e+00> : vector<8x128xf32>
    %24 = tpu.matmul %23, %7, %cst_11 {dimension_numbers = #tpu.dot_dimension_numbers<[1], [0], [0], [1], [0, 0, 1, 1], [], []>} : vector<8x104xf32>, vector<104x128xf32>, vector<8x128xf32> -> vector<8x128xf32>
    %c0_12 = arith.constant 0 : index
    %c0_13 = arith.constant 0 : index
    %25 = vector.load %arg4[%c0_12, %c0_13] : memref<8x128xf32, #tpu.memory_space<vmem>>, vector<8x128xf32>
    tpu.vector_store %arg4[%c0_12, %c0_13], %24 {strides = array<i32>} : memref<8x128xf32, #tpu.memory_space<vmem>>, vector<8x128xf32>,
    return
  }
}

</mosaic_0001>

<llo_original>
// kernel: visual_extractor.1
$region0: #{visual_extractor.1}
  #allocation0 [shape = 'u32[]', space=smem, size = 0x4, offset = 0x4, fixed_abs, tag = 'smem constant byte address 0x4 - core index']
  #allocation1 [shape = 'u32[144,128]{1,0:T(1,128)}', space=vmem, size = 0x12000, scoped, tag = 'internal scratch']
  %s0 = inlined_call_operand.vmem [shape: bf16[104,32], index: 0, kind: input, shape index: {}]
  %s1 = inlined_call_operand.vmem [shape: bf16[32,128], index: 1, kind: input, shape index: {}]
  %s2 = inlined_call_operand.vmem [shape: f32[1,128], index: 2, kind: input, shape index: {}]
  %s3 = inlined_call_operand.vmem [shape: f32[104,128], index: 3, kind: output, shape index: {0}]
  %s4 = inlined_call_operand.vmem [shape: f32[8,128], index: 4, kind: output, shape index: {1}]
  %5 = xla_tuple %s3, %s4
  %s6 = sld [smem:[#allocation0]]
  $region30: #{visual_extractor.1} parent=0
    _
  %s8 = ssub.s32 1, %s6
  %s9 = scalar_select 0, %s8, %s6
  // Predicated region
  $region2: #{visual_extractor.1} parent=0 // pred_check
    _
  $region3: #{visual_extractor.1} parent=0 // pred_check_branch
    %11 = sbr.rel (0) target = $region5
  $region4: #{visual_extractor.1} parent=0 // pred_region
    _
  $region5: #{visual_extractor.1} parent=0 // pred_fallthru
    _
  // Predicated region
  $region6: #{visual_extractor.1} parent=0 // pred_check
    _
  $region7: #{visual_extractor.1} parent=0 // pred_check_branch
    %13 = sbr.rel (0) target = $region9
  $region8: #{visual_extractor.1} parent=0 // pred_region
    _
  $region9: #{visual_extractor.1} parent=0 // pred_fallthru
    _
  // Predicated region
  $region10: #{visual_extractor.1} parent=0 // pred_check
    _
  $region11: #{visual_extractor.1} parent=0 // pred_check_branch
    %15 = sbr.rel (0) target = $region13
  $region12: #{visual_extractor.1} parent=0 // pred_region
    _
  $region13: #{visual_extractor.1} parent=0 // pred_fallthru
    _
  %v17 = vld [vmem:[%s0] sm:$0xf]
  %v18 = vld [vmem:[%s0 + $0x4] sm:$0xf]
  %v19 = vld [vmem:[%s0 + $0x8] sm:$0xf]
  %v20 = vld [vmem:[%s0 + $0xc] sm:$0xf]
  %v21 = vld [vmem:[%s0 + $0x10] sm:$0xf]
  %v22 = vld [vmem:[%s0 + $0x14] sm:$0xf]
  %v23 = vld [vmem:[%s0 + $0x18] sm:$0xf]
  %v24 = vld [vmem:[%s0 + $0x1c] sm:$0xf]
  %v25 = vld [vmem:[%s0 + $0x20] sm:$0xf]
  %v26 = vld [vmem:[%s0 + $0x24] sm:$0xf]
  %v27 = vld [vmem:[%s0 + $0x28] sm:$0xf]
  %v28 = vld [vmem:[%s0 + $0x2c] sm:$0xf]
  %v29 = vld [vmem:[%s0 + $0x30] sm:$0xf]
  %v30 = vld [vmem:[%s1] sm:$0xf]
  %v31 = vld [vmem:[%s1 + $0x4] sm:$0xf]
  %v32 = vld [vmem:[%s1 + $0x8] sm:$0xf]
  %v33 = vld [vmem:[%s1 + $0xc] sm:$0xf]
  %v34 = vld [vmem:[%s2] sm:$0x1]
  %v36 = vlaneseq
  %v37 = vshrl.u32 %v36, 7
  %v38 = vsub.s32 0, %v37
  %v39 = vrot.slane %v34, %v38
  %v54 = vunpack.c.l.b16 %v17
  %v55 = vunpack.c.l.b16 %v18
  %v56 = vunpack.c.l.b16 %v19
  %v57 = vunpack.c.l.b16 %v20
  %v58 = vunpack.c.l.b16 %v21
  %v59 = vunpack.c.l.b16 %v22
  %v60 = vunpack.c.l.b16 %v23
  %v61 = vunpack.c.l.b16 %v24
  %v62 = vunpack.c.l.b16 %v25
  %v63 = vunpack.c.l.b16 %v26
  %v64 = vunpack.c.l.b16 %v27
  %v65 = vunpack.c.l.b16 %v28
  %v66 = vunpack.c.l.b16 %v29
  %v67 = vpack.c.b16 %v55, %v54
  %v68 = vpack.c.b16 %v57, %v56
  %v69 = vpack.c.b16 %v59, %v58
  %v70 = vpack.c.b16 %v61, %v60
  %v71 = vpack.c.b16 %v63, %v62
  %v72 = vpack.c.b16 %v65, %v64
  %v73 = vpack.c.b16 %v66, %v66
  %v78 = vunpack.c.l.b16 %v30
  %v79 = vunpack.c.l.b16 %v31
  %v80 = vunpack.c.l.b16 %v32
  %v81 = vunpack.c.l.b16 %v33
  %v82 = vpack.c.b16 %v79, %v78
  %v83 = vpack.c.b16 %v81, %v80
  %vm86 = vcmask 261120
  %v88 = vsel %vm86, %v67, 0
  %v91 = vsel %vm86, %v68, 0
  %v94 = vsel %vm86, %v69, 0
  %v97 = vsel %vm86, %v70, 0
  %v100 = vsel %vm86, %v71, 0
  %v103 = vsel %vm86, %v72, 0
  %v106 = vsel %vm86, %v73, 0
  %108 = vmatprep.subr.bf16.mxu0 0
  %109 = vmatpush1.bf16.msra.mxu0 %v82
  %110 = vmatprep.subr.bf16.mxu0 0
  %111 = vmatpush1.bf16.msra.mxu0 %v83
  %112 = vmatprep.subr.bf16.mxu0 0
  %113 = vmatpush1.bf16.msra.mxu0 0
  %114 = vmatprep.subr.bf16.mxu0 0
  %115 = vmatpush1.bf16.msra.mxu0 0
  %116 = vmatprep.subr.bf16.mxu0 0
  %117 = vmatpush1.bf16.msra.mxu0 0
  %118 = vmatprep.subr.bf16.mxu0 0
  %119 = vmatpush1.bf16.msra.mxu0 0
  %120 = vmatprep.subr.bf16.mxu0 0
  %121 = vmatpush1.bf16.msra.mxu0 0
  %122 = vmatprep.subr.bf16.mxu0 0
  %123 = vmatpush1.bf16.msra.mxu0 0
  %124 = vmatprep.subr.bf16.mxu0 0
  %125 = vmatpush1.bf16.msra.mxu0 0
  %126 = vmatprep.subr.bf16.mxu0 0
  %127 = vmatpush1.bf16.msra.mxu0 0
  %128 = vmatprep.subr.bf16.mxu0 0
  %129 = vmatpush1.bf16.msra.mxu0 0
  %130 = vmatprep.subr.bf16.mxu0 0
  %131 = vmatpush1.bf16.msra.mxu0 0
  %132 = vmatprep.subr.bf16.mxu0 0
  %133 = vmatpush1.bf16.msra.mxu0 0
  %134 = vmatprep.subr.bf16.mxu0 0
  %135 = vmatpush1.bf16.msra.mxu0 0
  %136 = vmatprep.subr.bf16.mxu0 0
  %137 = vmatpush1.bf16.msra.mxu0 0
  %138 = vmatprep.subr.bf16.mxu0 0
  %139 = vmatpush1.bf16.msra.mxu0 0
  %140 = vmatprep.mubr.bf16.mxu0 0
  %141 = vmatmul.mubr.bf16.gmra.mrb[0].mxu0 %v88
  %v142 = vpop.f32.mrb[0].mxu0
  %v143 = vadd.f32 %v39, %v142
  %v144 = vpop.f32.mrb[0].mxu0
  %v145 = vpop.f32.mrb[0].mxu0
  %v146 = vadd.f32 %v39, %v145
  %v147 = vpop.f32.mrb[0].mxu0
  %148 = vmatprep.mubr.bf16.mxu0 0
  %149 = vmatmul.mubr.bf16.gmra.mrb[0].mxu0 %v91
  %v150 = vpop.f32.mrb[0].mxu0
  %v151 = vadd.f32 %v39, %v150
  %v152 = vpop.f32.mrb[0].mxu0
  %v153 = vpop.f32.mrb[0].mxu0
  %v154 = vadd.f32 %v39, %v153
  %v155 = vpop.f32.mrb[0].mxu0
  %156 = vmatprep.mubr.bf16.mxu0 0
  %157 = vmatmul.mubr.bf16.gmra.mrb[0].mxu0 %v94
  %v158 = vpop.f32.mrb[0].mxu0
  %v159 = vadd.f32 %v39, %v158
  %v160 = vpop.f32.mrb[0].mxu0
  %v161 = vpop.f32.mrb[0].mxu0
  %v162 = vadd.f32 %v39, %v161
  %v163 = vpop.f32.mrb[0].mxu0
  %164 = vmatprep.mubr.bf16.mxu0 0
  %165 = vmatmul.mubr.bf16.gmra.mrb[0].mxu0 %v97
  %v166 = vpop.f32.mrb[0].mxu0
  %v167 = vadd.f32 %v39, %v166
  %v168 = vpop.f32.mrb[0].mxu0
  %v169 = vpop.f32.mrb[0].mxu0
  %v170 = vadd.f32 %v39, %v169
  %v171 = vpop.f32.mrb[0].mxu0
  %172 = vmatprep.mubr.bf16.mxu0 0
  %173 = vmatmul.mubr.bf16.gmra.mrb[0].mxu0 %v100
  %v174 = vpop.f32.mrb[0].mxu0
  %v175 = vadd.f32 %v39, %v174
  %v176 = vpop.f32.mrb[0].mxu0
  %v177 = vpop.f32.mrb[0].mxu0
  %v178 = vadd.f32 %v39, %v177
  %v179 = vpop.f32.mrb[0].mxu0
  %180 = vmatprep.mubr.bf16.mxu0 0
  %181 = vmatmul.mubr.bf16.gmra.mrb[0].mxu0 %v103
  %v182 = vpop.f32.mrb[0].mxu0
  %v183 = vadd.f32 %v39, %v182
  %v184 = vpop.f32.mrb[0].mxu0
  %v185 = vpop.f32.mrb[0].mxu0
  %v186 = vadd.f32 %v39, %v185
  %v187 = vpop.f32.mrb[0].mxu0
  %188 = vmatprep.mubr.bf16.mxu0 0
  %189 = vmatmul.mubr.bf16.gmra.mrb[0].mxu0 %v106
  %v190 = vpop.f32.mrb[0].mxu0
  %v191 = vadd.f32 %v39, %v190
  %v192 = vpop.f32.mrb[0].mxu0
  %v193 = vpop.f32.mrb[0].mxu0
  %v194 = vpop.f32.mrb[0].mxu0
  %195 = vdwg.mxu0
  %v196 = vmax.f32 %v143, 0.0
  %v197 = vmax.f32 %v146, 0.0
  %v198 = vmax.f32 %v151, 0.0
  %v199 = vmax.f32 %v154, 0.0
  %v200 = vmax.f32 %v159, 0.0
  %v201 = vmax.f32 %v162, 0.0
  %v202 = vmax.f32 %v167, 0.0
  %v203 = vmax.f32 %v170, 0.0
  %v204 = vmax.f32 %v175, 0.0
  %v205 = vmax.f32 %v178, 0.0
  %v206 = vmax.f32 %v183, 0.0
  %v207 = vmax.f32 %v186, 0.0
  %v208 = vmax.f32 %v191, 0.0
  %209 = vst [vmem:[%s3] sm:$0xff] %v196
  %210 = vst [vmem:[%s3 + $0x8] sm:$0xff] %v197
  %211 = vst [vmem:[%s3 + $0x10] sm:$0xff] %v198
  %212 = vst [vmem:[%s3 + $0x18] sm:$0xff] %v199
  %213 = vst [vmem:[%s3 + $0x20] sm:$0xff] %v200
  %214 = vst [vmem:[%s3 + $0x28] sm:$0xff] %v201
  %215 = vst [vmem:[%s3 + $0x30] sm:$0xff] %v202
  %216 = vst [vmem:[%s3 + $0x38] sm:$0xff] %v203
  %217 = vst [vmem:[%s3 + $0x40] sm:$0xff] %v204
  %218 = vst [vmem:[%s3 + $0x48] sm:$0xff] %v205
  %219 = vst [vmem:[%s3 + $0x50] sm:$0xff] %v206
  %220 = vst [vmem:[%s3 + $0x58] sm:$0xff] %v207
  %221 = vst [vmem:[%s3 + $0x60] sm:$0xff] %v208
  %v222 = vlaneseq
  %v223 = vand.u32 %v222, 127
  %v224 = vlaneseq
  %v225 = vshrl.u32 %v224, 7
  %v226 = vmul.u32 %v225, 49
  %vm227 = vcmp.ge.s32.totalorder %v223, %v226
  %v228 = vadd.s32 %v226, 49
  %vm229 = vcmp.lt.s32.totalorder %v223, %v228
  %vm230 = vmand %vm227, %vm229
  %vm231 = vcmp.lt.s32.totalorder %v223, 98
  %vm232 = vmand %vm230, %vm231
  %v233 = vsel %vm232, 0.020408163, 0.0
  %vm234 = vcmask 850944
  %v236 = vsel %vm234, %v233, 0
  %238 = vmatprep.subr.mxu0 0.0
  %239 = vmatpush1.msra.mxu0 %v196
  %240 = vmatprep.subr.mxu0 0.0
  %241 = vmatpush1.msra.mxu0 %v197
  %242 = vmatprep.subr.mxu0 0.0
  %243 = vmatpush1.msra.mxu0 %v198
  %244 = vmatprep.subr.mxu0 0.0
  %245 = vmatpush1.msra.mxu0 %v199
  %246 = vmatprep.subr.mxu0 0.0
  %247 = vmatpush1.msra.mxu0 %v200
  %248 = vmatprep.subr.mxu0 0.0
  %249 = vmatpush1.msra.mxu0 %v201
  %250 = vmatprep.subr.mxu0 0.0
  %251 = vmatpush1.msra.mxu0 %v202
  %252 = vmatprep.subr.mxu0 0.0
  %253 = vmatpush1.msra.mxu0 %v203
  %254 = vmatprep.subr.mxu0 0.0
  %255 = vmatpush1.msra.mxu0 %v204
  %256 = vmatprep.subr.mxu0 0.0
  %257 = vmatpush1.msra.mxu0 %v205
  %258 = vmatprep.subr.mxu0 0.0
  %259 = vmatpush1.msra.mxu0 %v206
  %260 = vmatprep.subr.mxu0 0.0
  %261 = vmatpush1.msra.mxu0 %v207
  %262 = vmatprep.subr.mxu0 0.0
  %263 = vmatpush1.msra.mxu0 %v208
  %264 = vmatprep.subr.mxu0 0.0
  %265 = vmatpush1.msra.mxu0 0.0
  %266 = vmatprep.subr.mxu0 0.0
  %267 = vmatpush1.msra.mxu0 0.0
  %268 = vmatprep.subr.mxu0 0.0
  %269 = vmatpush1.msra.mxu0 0.0
  %270 = vmatprep.subr.mxu0 0.0
  %271 = vmatpush1.msra.mxu0 0.0
  %272 = vmatprep.subr.mxu0 0.0
  %273 = vmatpush1.msra.mxu0 0.0
  %274 = vmatprep.subr.mxu0 0.0
  %275 = vmatpush1.msra.mxu0 0.0
  %276 = vmatprep.subr.mxu0 0.0
  %277 = vmatpush1.msra.mxu0 0.0
  %278 = vmatprep.subr.mxu0 0.0
  %279 = vmatpush1.msra.mxu0 0.0
  %280 = vmatprep.subr.mxu0 0.0
  %281 = vmatpush1.msra.mxu0 0.0
  %282 = vmatprep.subr.mxu0 0.0
  %283 = vmatpush1.msra.mxu0 0.0
  %284 = vmatprep.subr.mxu0 0.0
  %285 = vmatpush1.msra.mxu0 0.0
  %286 = vmatprep.subr.mxu0 0.0
  %287 = vmatpush1.msra.mxu0 0.0
  %288 = vmatprep.subr.mxu0 0.0
  %289 = vmatpush1.msra.mxu0 0.0
  %290 = vmatprep.subr.mxu0 0.0
  %291 = vmatpush1.msra.mxu0 0.0
  %292 = vmatprep.subr.mxu0 0.0
  %293 = vmatpush1.msra.mxu0 0.0
  %294 = vmatprep.subr.mxu0 0.0
  %295 = vmatpush1.msra.mxu0 0.0
  %296 = vmatprep.subr.mxu0 0.0
  %297 = vmatpush1.msra.mxu0 0.0
  %298 = vmatprep.subr.mxu0 0.0
  %299 = vmatpush1.msra.mxu0 0.0
  %300 = vmatprep.subr.mxu0 0.0
  %301 = vmatpush1.msra.mxu0 0.0
  %302 = vmatprep.mubr.f32.mxu0 0.0
  %303 = vmatmul.mubr.f32.gmra.mrb[0].mxu0 %v236
  %v304 = vpop.f32.mrb[0].mxu0
  %v305 = vadd.f32 0.0, %v304
  %v306 = vpop.f32.mrb[0].mxu0
  %307 = vdwg.mxu0
  %308 = vst [vmem:[%s4] sm:$0xff] %v305
  // Predicated region
  $region14: #{visual_extractor.1} parent=0 // pred_check
    _
  $region15: #{visual_extractor.1} parent=0 // pred_check_branch
    %310 = sbr.rel (0) target = $region17
  $region16: #{visual_extractor.1} parent=0 // pred_region
    _
  $region17: #{visual_extractor.1} parent=0 // pred_fallthru
    _
  // Predicated region
  $region18: #{visual_extractor.1} parent=0 // pred_check
    _
  $region19: #{visual_extractor.1} parent=0 // pred_check_branch
    %312 = sbr.rel (0) target = $region21
  $region20: #{visual_extractor.1} parent=0 // pred_region
    _
  $region21: #{visual_extractor.1} parent=0 // pred_fallthru
    _
  // Predicated region
  $region22: #{visual_extractor.1} parent=0 // pred_check
    _
  $region23: #{visual_extractor.1} parent=0 // pred_check_branch
    %314 = sbr.rel (0) target = $region25
  $region24: #{visual_extractor.1} parent=0 // pred_region
    _
  $region25: #{visual_extractor.1} parent=0 // pred_fallthru
    _
  // Predicated region
  $region26: #{visual_extractor.1} parent=0 // pred_check
    _
  $region27: #{visual_extractor.1} parent=0 // pred_check_branch
    %316 = sbr.rel (0) target = $region29
  $region28: #{visual_extractor.1} parent=0 // pred_region
    _
  $region29: #{visual_extractor.1} parent=0 // pred_fallthru
    _

</llo_original>
